<compile_context>
chip_gen: v5e
topology: v5e:2x2
jax: 0.10.0
libtpu: 0.0.40
codegen_flags: <defaults>
</compile_context>

<pallas_src>
import numpy as np
import jax
import jax.numpy as jnp
from jax import lax
from jax.experimental import pallas as pl
from jax.experimental.pallas import tpu as pltpu

_NEG_SLOPE = 0.2                      # LeakyReLU negative slope (module default)
_VMEM_LIMIT = 48 * 1024 * 1024        # fits v7x (64 MiB phys); raise on v5e/v6e


def _leaky_relu(x):
    return jnp.where(x > 0, x, _NEG_SLOPE * x)


def _elu(x):
    return jnp.where(x > 0, x, jnp.expm1(jnp.minimum(x, 0.0)))


def _round_up(x, m):
    return ((x + m - 1) // m) * m


# ----------------------------------- kernels -----------------------------------

def node_proj_kernel(h_ref, w_ref, bias_ref, y_ref):
    """K1: one fused, lane-dense matmul per node tile.

    Column layout of w_ref / y_ref:
        [ emb (feat-major, D*H) | a_l proj (H) | a_r proj (H) | residual (D*H, opt) ]
    NaN zeroing is applied to the fused output; equivalent to torch's emb[isnan]=0
    whenever h @ W is NaN-free (true for finite inputs/weights).
    """
    y = jnp.dot(h_ref[...], w_ref[...], preferred_element_type=jnp.float32)
    y = y + bias_ref[...]
    y = jnp.where(y == y, y, 0.0)
    y_ref[...] = y.astype(y_ref.dtype)


def make_edge_agg_kernel(*, num_heads, out_dim, n_pad, edge_tile, use_prev,
                         use_residual, use_activation, need_alpha, beta):
    """K2: edge-tile grid ("arbitrary").  Builds src/dst one-hots in-register from the
    streamed int32 indices, gathers [emb | h_l] and h_r (MXU), and scatter-accumulates
    the fused message [z*emb | z | prev*emb] into one resident f32 accumulator.
    Layer output (and the inverse denominator for K3) written in the last-step
    epilogue via pl.when."""
    H, D = num_heads, out_dim
    DH = D * H
    contract_e = (((0,), (0,)), ((), ()))    # contract over the edge axis (one_hot.T @ x)

    def kernel(*refs):
        it = iter(refs)
        src_ref = next(it)
        dst_ref = next(it)
        he_ref = next(it)
        prev_ref = next(it) if use_prev else None
        y_ref = next(it)
        gmax_ref = next(it)
        bcast_ref = next(it)
        z_ref = next(it) if need_alpha else None
        out_ref = next(it)
        invd_ref = next(it) if need_alpha else None
        acc_ref = next(it)

        step = pl.program_id(0)

        @pl.when(step == 0)
        def _init():
            acc_ref[...] = jnp.zeros_like(acc_ref)

        # In-register one-hot rows (padded edges have index -1 -> all-zero rows).
        lane = lax.broadcasted_iota(jnp.int32, (edge_tile, n_pad), 1)
        src_oh = (src_ref[...] == lane).astype(jnp.bfloat16)
        dst_oh = (dst_ref[...] == lane).astype(jnp.bfloat16)

        # Fused gather of [emb | h_l] rows by src, h_r rows by dst.
        g = jnp.dot(src_oh, y_ref[:, :DH + H], preferred_element_type=jnp.float32)
        emb_src = g[:, :DH]
        hl_e = g[:, DH:]
        hr_e = jnp.dot(dst_oh, y_ref[:, DH + H:DH + 2 * H],
                       preferred_element_type=jnp.float32)

        logits = _leaky_relu(hl_e + hr_e + he_ref[...])
        z = jnp.exp(logits - gmax_ref[...])          # exp arg <= 0 (gmax is an upper bound)
        if need_alpha:
            z_ref[...] = z

        # head -> feature broadcast via a tiny constant matmul (no per-step lane concat).
        if use_prev:
            zp = jnp.concatenate([z, prev_ref[...]], axis=-1)          # (te, 2H)
        else:
            zp = z                                                      # (te, H)
        zpb = jnp.dot(zp.astype(jnp.bfloat16), bcast_ref[...],
                      preferred_element_type=jnp.float32)               # (te, DH | 2DH)

        msg = zpb[:, :DH] * emb_src
        if use_prev:
            msg = jnp.concatenate([msg, z, zpb[:, DH:] * emb_src], axis=-1)
        else:
            msg = jnp.concatenate([msg, z], axis=-1)

        # Fused scatter-accumulate: acc columns = [Sz (DH) | denom (H) | Sp (DH, opt)].
        acc_ref[...] += lax.dot_general(dst_oh, msg.astype(jnp.bfloat16), contract_e,
                                        preferred_element_type=jnp.float32)

        @pl.when(step == pl.num_programs(0) - 1)
        def _epilogue():
            acc = acc_ref[...]
            sz = acc[:, :DH]
            denom = acc[:, DH:DH + H]
            inv = jnp.where(denom > 0.0, pl.reciprocal(denom, approx=True), 0.0)
            invb = jnp.concatenate([inv] * D, axis=-1)   # one-time epilogue lane repeat
            scale = (1.0 - beta) if use_prev else 1.0
            out = scale * sz * invb
            if use_prev:
                out = out + beta * acc[:, DH + H:]
            if use_residual:
                out = out + y_ref[:, DH + 2 * H:].astype(jnp.float32)
            if use_activation:
                out = _elu(out)
            out_ref[...] = out.astype(out_ref.dtype)
            if need_alpha:
                invd_ref[...] = inv.astype(invd_ref.dtype)

    return kernel


def make_alpha_kernel(*, n_pad, edge_tile, use_prev, beta):
    """K3: alpha = (1-beta) * z * inv_denom[dst] + beta * prev.  The inverse denominator
    is gathered with a bf16 one-hot dot (no divide, no f32 matmul path)."""
    def kernel(*refs):
        it = iter(refs)
        dst_ref = next(it)
        z_ref = next(it)
        prev_ref = next(it) if use_prev else None
        invd_ref = next(it)
        alpha_ref = next(it)

        lane = lax.broadcasted_iota(jnp.int32, (edge_tile, n_pad), 1)
        dst_oh = (dst_ref[...] == lane).astype(jnp.bfloat16)
        inv_e = jnp.dot(dst_oh, invd_ref[...], preferred_element_type=jnp.float32)
        alpha = z_ref[...] * inv_e
        if use_prev:
            alpha = alpha * (1.0 - beta) + beta * prev_ref[...]
        alpha_ref[...] = alpha

    return kernel


def linear_kernel(x_ref, w_ref, b_ref, o_ref):
    o_ref[...] = jnp.dot(x_ref[...], w_ref[...],
                         preferred_element_type=jnp.float32) + b_ref[...]


# --------------- parameter / helper construction (plain-JAX glue) ---------------

def xavier_uniform(key, shape, gain=1.414):
    fan_in, fan_out = shape[-2], shape[-1]
    limit = gain * np.sqrt(6.0 / (fan_in + fan_out))
    return jax.random.uniform(key, shape, minval=-limit, maxval=limit, dtype=jnp.float32)


def attn_proj_featmajor(a):
    """(H, D) attention vector -> (D*H, H) matrix M with M[d*H+h, h] = a[h, d], so that
    for feat-major emb (column d*H+h):  emb @ M == (a * emb.view(N,H,D)).sum(-1)."""
    H, D = a.shape
    eye = jnp.eye(H, dtype=a.dtype)
    return (a.T[:, :, None] * eye[None, :, :]).reshape(D * H, H)


def weight_to_featmajor(W, H, D):
    """Permute W columns (in, H*D head-major) -> (in, D*H feat-major); folds the torch
    permute(0,2,1).view(-1, out_dim*num_heads) shuffle into the weight."""
    return W.reshape(-1, H, D).transpose(0, 2, 1).reshape(-1, D * H)


def init_layer_params(key, in_dim, out_dim, num_heads, edge_dim, num_etypes, residual):
    keys = jax.random.split(key, 8)
    p = {
        'num_heads': num_heads, 'out_dim': out_dim, 'edge_dim': edge_dim,
        'edge_emb': xavier_uniform(keys[0], (num_etypes, edge_dim)),
        'W': xavier_uniform(keys[1], (in_dim, out_dim * num_heads)),
        'W_r': xavier_uniform(keys[2], (num_etypes, edge_dim, edge_dim * num_heads)),
        'a_l': xavier_uniform(keys[3], (num_heads, out_dim)),
        'a_r': xavier_uniform(keys[4], (num_heads, out_dim)),
        'a_e': xavier_uniform(keys[5], (num_heads, edge_dim)),
    }
    if residual:
        bound = 1.0 / np.sqrt(in_dim)
        p['W_res'] = jax.random.uniform(keys[6], (in_dim, out_dim * num_heads),
                                        minval=-bound, maxval=bound, dtype=jnp.float32)
        p['b_res'] = jax.random.uniform(keys[7], (1, out_dim * num_heads),
                                        minval=-bound, maxval=bound, dtype=jnp.float32)
    return p


def run_simple_hgn_layer(h, p, graph, prev_alpha, *, use_prev_alpha, use_residual,
                         use_activation, need_alpha, beta, node_tile, edge_tile):
    N_pad, in_dim = h.shape
    E_pad = graph['src_ids'].shape[0]
    H, D = p['num_heads'], p['out_dim']
    DH = D * H

    # -- parameter-only precompute (graph-size independent glue) --
    # TypedLinear over per-type edge embeddings + a_e reduction -> (T, H).
    typed = jnp.einsum('td,tdk->tk', p['edge_emb'], p['W_r']).reshape(-1, H, p['edge_dim'])
    he_type = jnp.sum(typed * p['a_e'][None, :, :], axis=-1)              # (T, H)
    he_edge = he_type[graph['etype']]                                     # (E_pad, H)

    # Fused K1 weight: [emb (feat-major) | a_l proj | a_r proj | residual].
    W_fm = weight_to_featmajor(p['W'], H, D)
    Wl = W_fm @ attn_proj_featmajor(p['a_l'])
    Wr = W_fm @ attn_proj_featmajor(p['a_r'])
    cols = [W_fm, Wl, Wr]
    if use_residual:
        cols.append(p['W_res'])
    W_all = jnp.concatenate(cols, axis=1).astype(jnp.bfloat16)
    Wtot = W_all.shape[1]
    bias_row = jnp.zeros((1, Wtot), jnp.float32)
    if use_residual:
        bias_row = bias_row.at[:, DH + 2 * H:].set(p['b_res'])

    h_bf = h.astype(jnp.bfloat16)
    n_nt = N_pad // node_tile
    n_et = E_pad // edge_tile

    # ---- K1: fused node projection (one wide lane-dense output per node tile) ----
    y = pl.pallas_call(
        node_proj_kernel,
        grid=(n_nt,),
        in_specs=[
            pl.BlockSpec((node_tile, in_dim), lambda i: (i, 0)),
            pl.BlockSpec((in_dim, Wtot), lambda i: (0, 0)),
            pl.BlockSpec((1, Wtot), lambda i: (0, 0)),
        ],
        out_specs=pl.BlockSpec((node_tile, Wtot), lambda i: (i, 0)),
        out_shape=jax.ShapeDtypeStruct((N_pad, Wtot), jnp.bfloat16),
        compiler_params=pltpu.CompilerParams(
            dimension_semantics=("parallel",), vmem_limit_bytes=_VMEM_LIMIT),
    )(h_bf, W_all, bias_row)

    # Per-head upper bound on the attention logits (cancels exactly in z / denom).
    hl_max = jnp.max(y[:, DH:DH + H].astype(jnp.float32), axis=0)
    hr_max = jnp.max(y[:, DH + H:DH + 2 * H].astype(jnp.float32), axis=0)
    gmax = jnp.maximum(_leaky_relu(hl_max + hr_max + jnp.max(he_type, axis=0)),
                       0.0).reshape(1, H)

    # head -> feature (feat-major) broadcast matrix for the in-kernel tiny matmul.
    bcast = jnp.tile(jnp.eye(H, dtype=jnp.float32), (1, D))               # (H, DH)
    if use_prev_alpha:
        B = jnp.zeros((2 * H, 2 * DH), jnp.float32)
        B = B.at[:H, :DH].set(bcast).at[H:, DH:].set(bcast)
    else:
        B = bcast
    B = B.astype(jnp.bfloat16)

    accW = DH + H + (DH if use_prev_alpha else 0)

    edge_spec_1 = pl.BlockSpec((edge_tile, 1), lambda e: (e, 0))
    edge_spec_H = pl.BlockSpec((edge_tile, H), lambda e: (e, 0))

    def res_spec(shape):                       # constant-index resident block
        return pl.BlockSpec(shape, lambda e: (0, 0))

    # ---- K2: edge attention + aggregation (edge tiles, resident accumulator) ----
    in_arrays = [graph['src_ids'], graph['dst_ids'], he_edge]
    in_specs = [edge_spec_1, edge_spec_1, edge_spec_H]
    if use_prev_alpha:
        in_arrays.append(prev_alpha)
        in_specs.append(edge_spec_H)
    in_arrays += [y, gmax, B]
    in_specs += [res_spec((N_pad, Wtot)), res_spec((1, H)), res_spec(tuple(B.shape))]

    if need_alpha:
        out_shape = (jax.ShapeDtypeStruct((E_pad, H), jnp.float32),     # z (numerator)
                     jax.ShapeDtypeStruct((N_pad, DH), jnp.bfloat16),   # layer output
                     jax.ShapeDtypeStruct((N_pad, H), jnp.bfloat16))    # 1/denom for K3
        out_specs = (edge_spec_H, res_spec((N_pad, DH)), res_spec((N_pad, H)))
    else:
        out_shape = jax.ShapeDtypeStruct((N_pad, DH), jnp.bfloat16)
        out_specs = res_spec((N_pad, DH))

    k2 = make_edge_agg_kernel(num_heads=H, out_dim=D, n_pad=N_pad, edge_tile=edge_tile,
                              use_prev=use_prev_alpha, use_residual=use_residual,
                              use_activation=use_activation, need_alpha=need_alpha,
                              beta=beta)
    results = pl.pallas_call(
        k2,
        grid=(n_et,),
        in_specs=in_specs,
        out_specs=out_specs,
        out_shape=out_shape,
        scratch_shapes=[pltpu.VMEM((N_pad, accW), jnp.float32)],
        compiler_params=pltpu.CompilerParams(
            dimension_semantics=("arbitrary",), vmem_limit_bytes=_VMEM_LIMIT),
    )(*in_arrays)

    if not need_alpha:
        return results, None
    z, out, invd = results

    # ---- K3: normalized (+ edge residual) alpha for the next layer ----
    a_in = [graph['dst_ids'], z]
    a_specs = [edge_spec_1, edge_spec_H]
    if use_prev_alpha:
        a_in.append(prev_alpha)
        a_specs.append(edge_spec_H)
    a_in.append(invd)
    a_specs.append(res_spec((N_pad, H)))

    k3 = make_alpha_kernel(n_pad=N_pad, edge_tile=edge_tile,
                           use_prev=use_prev_alpha, beta=beta)
    alpha = pl.pallas_call(
        k3,
        grid=(n_et,),
        in_specs=a_specs,
        out_specs=edge_spec_H,
        out_shape=jax.ShapeDtypeStruct((E_pad, H), jnp.float32),
        compiler_params=pltpu.CompilerParams(
            dimension_semantics=("parallel",), vmem_limit_bytes=_VMEM_LIMIT),
    )(*a_in)

    return out, alpha


if __name__ == "__main__":
    key = jax.random.PRNGKey(0)

    # ---- small heterogeneous graph, already in homogeneous form ----
    # ntypes = ['paper', 'author'], category = 'paper'
    # etypes: 0 paper->paper, 1 author->paper, 2 paper->author
    n_paper, n_author = 140, 60
    N = n_paper + n_author                        # 200
    in_dim, hid_dim, num_heads, num_classes, num_layers = 64, 128, 4, 3, 3
    out_dim = hid_dim // num_heads                # 32
    edge_dim = hid_dim                            # 128
    num_etypes = 3
    beta = 0.05

    NODE_TILE, EDGE_TILE = 128, 128               # use 256 on v6e/v7x-sized graphs

    kg = jax.random.split(key, 12)
    e_pp, e_ap, e_pa = 160, 100, 100
    src = jnp.concatenate([
        jax.random.randint(kg[0], (e_pp,), 0, n_paper),
        jax.random.randint(kg[2], (e_ap,), n_paper, N),
        jax.random.randint(kg[4], (e_pa,), 0, n_paper)]).astype(jnp.int32)
    dst = jnp.concatenate([
        jax.random.randint(kg[1], (e_pp,), 0, n_paper),
        jax.random.randint(kg[3], (e_ap,), 0, n_paper),
        jax.random.randint(kg[5], (e_pa,), n_paper, N)]).astype(jnp.int32)
    etype = jnp.concatenate([jnp.zeros((e_pp,), jnp.int32),
                             jnp.ones((e_ap,), jnp.int32),
                             jnp.full((e_pa,), 2, jnp.int32)])
    E = int(src.shape[0])                         # 360

    N_pad = _round_up(N, NODE_TILE)               # 256
    E_pad = _round_up(E, EDGE_TILE)               # 384
    pad_e = E_pad - E
    graph = {
        # padded edges get index -1 -> all-zero one-hot rows (no gather, no scatter)
        'src_ids': jnp.pad(src, (0, pad_e), constant_values=-1).reshape(E_pad, 1),
        'dst_ids': jnp.pad(dst, (0, pad_e), constant_values=-1).reshape(E_pad, 1),
        'etype': jnp.pad(etype, (0, pad_e)),
    }

    # homogeneous node features (all node types share in_dim, as dgl.to_homogeneous requires)
    h0 = jax.random.normal(kg[6], (N, in_dim), jnp.float32)
    h = jnp.pad(h0, ((0, N_pad - N), (0, 0)))

    layer_defs = [
        dict(in_dim=in_dim,  residual=False, activation=True,  use_prev_alpha=False),
        dict(in_dim=hid_dim, residual=True,  activation=True,  use_prev_alpha=True),
        dict(in_dim=hid_dim, residual=False, activation=False, use_prev_alpha=True),
    ]
    pkeys = jax.random.split(kg[7], num_layers)
    layers = [init_layer_params(pkeys[l], layer_defs[l]['in_dim'], out_dim, num_heads,
                                edge_dim, num_etypes, layer_defs[l]['residual'])
              for l in range(num_layers)]
    Wc = xavier_uniform(kg[8], (hid_dim, num_classes), gain=1.0)
    bc = jax.random.uniform(kg[9], (1, num_classes), minval=-0.1, maxval=0.1,
                            dtype=jnp.float32)

    # ---- forward ----
    prev_alpha = jnp.zeros((E_pad, num_heads), jnp.float32)
    cur = h
    for l in range(num_layers):
        need_alpha = l < num_layers - 1           # last layer's alpha is never used
        cur, prev_alpha = run_simple_hgn_layer(
            cur, layers[l], graph, prev_alpha,
            use_prev_alpha=layer_defs[l]['use_prev_alpha'],
            use_residual=layer_defs[l]['residual'],
            use_activation=layer_defs[l]['activation'],
            need_alpha=need_alpha,
            beta=beta, node_tile=NODE_TILE, edge_tile=EDGE_TILE)

    # to_hetero_feat + classifier on the category ('paper') nodes (ids [0, n_paper)).
    # Pad num_classes to a lane-dense 128-wide output, slice afterwards.
    NC_PAD = 128
    Wc_pad = jnp.zeros((hid_dim, NC_PAD), jnp.float32).at[:, :num_classes].set(Wc)
    bc_pad = jnp.zeros((1, NC_PAD), jnp.float32).at[:, :num_classes].set(bc)
    h_cat = cur[:n_paper]                          # bf16
    vm = pl.BlockSpec(memory_space=pltpu.MemorySpace.VMEM)
    logits_pad = pl.pallas_call(
        linear_kernel,
        out_shape=jax.ShapeDtypeStruct((n_paper, NC_PAD), jnp.float32),
        in_specs=[vm, vm, vm],
        out_specs=vm,
    )(h_cat, Wc_pad.astype(jnp.bfloat16), bc_pad)
    logits = logits_pad[:, :num_classes]

    logits = jax.block_until_ready(logits)
    assert logits.shape == (n_paper, num_classes)
    assert bool(jnp.all(jnp.isfinite(logits)))
    print("KERNEL_OK")
</pallas_src>

<mosaic_0001>
module attributes {stable_mosaic.version = 11 : i64} {
  func.func @node_proj_kernel(%arg0: i32, %arg1: memref<128x64xbf16, #tpu.memory_space<vmem>>, %arg2: memref<64x136xbf16, #tpu.memory_space<vmem>>, %arg3: memref<1x136xf32, #tpu.memory_space<vmem>>, %arg4: memref<128x136xbf16, #tpu.memory_space<vmem>>) attributes {dimension_semantics = [#tpu.dimension_semantics<parallel>], iteration_bounds = array<i64: 2>, scalar_prefetch = 0 : i64, scratch_operands = 0 : i64, tpu.core_type = #tpu.core_type<tc>, window_params = [{transform_indices = @transform_0, window_bounds = array<i64: 128, 64>}, {pipeline_mode = #tpu.pipeline_mode<synchronous>, transform_indices = @transform_1, window_bounds = array<i64: 64, 136>}, {pipeline_mode = #tpu.pipeline_mode<synchronous>, transform_indices = @transform_2, window_bounds = array<i64: 1, 136>}, {transform_indices = @transform_3, window_bounds = array<i64: 128, 136>}]} {
    %c0 = arith.constant 0 : index
    %c0_0 = arith.constant 0 : index
    %0 = vector.load %arg1[%c0, %c0_0] : memref<128x64xbf16, #tpu.memory_space<vmem>>, vector<128x64xbf16>
    %c0_1 = arith.constant 0 : index
    %c0_2 = arith.constant 0 : index
    %1 = vector.load %arg2[%c0_1, %c0_2] : memref<64x136xbf16, #tpu.memory_space<vmem>>, vector<64x136xbf16>
    %cst = arith.constant dense<0.000000e+00> : vector<128x136xf32>
    %2 = tpu.matmul %0, %1, %cst {dimension_numbers = #tpu.dot_dimension_numbers<[1], [0], [0], [1], [0, 0, 1, 1], [], []>} : vector<128x64xbf16>, vector<64x136xbf16>, vector<128x136xf32> -> vector<128x136xf32>
    %c0_3 = arith.constant 0 : index
    %c0_4 = arith.constant 0 : index
    %3 = vector.load %arg3[%c0_3, %c0_4] : memref<1x136xf32, #tpu.memory_space<vmem>>, vector<1x136xf32>
    %4 = vector.broadcast %3 : vector<1x136xf32> to vector<128x136xf32>
    %5 = arith.addf %2, %4 : vector<128x136xf32>
    %6 = arith.cmpf oeq, %5, %5 : vector<128x136xf32>
    %cst_5 = arith.constant 0.000000e+00 : f32
    %7 = vector.broadcast %cst_5 : f32 to vector<128x136xf32>
    %8 = arith.select %6, %5, %7 : vector<128x136xi1>, vector<128x136xf32>
    %9 = arith.truncf %8 : vector<128x136xf32> to vector<128x136xbf16>
    %c0_6 = arith.constant 0 : index
    %c0_7 = arith.constant 0 : index
    %10 = vector.load %arg4[%c0_6, %c0_7] : memref<128x136xbf16, #tpu.memory_space<vmem>>, vector<128x136xbf16>
    tpu.vector_store %arg4[%c0_6, %c0_7], %9 {strides = array<i32>} : memref<128x136xbf16, #tpu.memory_space<vmem>>, vector<128x136xbf16>,
    return
  }
  func.func @transform_0(%arg0: i32) -> (i32, i32) {
    %c0_i32 = arith.constant 0 : i32
    %c0_i32_0 = arith.constant 0 : i32
    return %arg0, %c0_i32 : i32, i32
  }
  func.func @transform_1(%arg0: i32) -> (i32, i32) {
    %c0_i32 = arith.constant 0 : i32
    %c0_i32_0 = arith.constant 0 : i32
    %c0_i32_1 = arith.constant 0 : i32
    return %c0_i32, %c0_i32_0 : i32, i32
  }
  func.func @transform_2(%arg0: i32) -> (i32, i32) {
    %c0_i32 = arith.constant 0 : i32
    %c0_i32_0 = arith.constant 0 : i32
    %c0_i32_1 = arith.constant 0 : i32
    return %c0_i32, %c0_i32_0 : i32, i32
  }
  func.func @transform_3(%arg0: i32) -> (i32, i32) {
    %c0_i32 = arith.constant 0 : i32
    %c0_i32_0 = arith.constant 0 : i32
    return %arg0, %c0_i32 : i32, i32
  }
}

</mosaic_0001>

<llo_original>
// kernel: tpu_custom_call.1
$region0: #{tpu_custom_call.1}
  #allocation0 [shape = 'u32[]', space=smem, size = 0x4, offset = 0x4, fixed_abs, tag = 'smem constant byte address 0x4 - core index']
  #allocation1 [shape = 'u32[72,128]{1,0:T(1,128)}', space=vmem, size = 0x9000, scoped, tag = 'internal scratch']
  %s0 = inlined_call_operand.vmem [shape: bf16[256,64], index: 0, kind: input, shape index: {}]
  %s1 = inlined_call_operand.vmem [shape: bf16[64,136], index: 1, kind: input, shape index: {}]
  %s2 = inlined_call_operand.vmem [shape: f32[1,136], index: 2, kind: input, shape index: {}]
  %s3 = inlined_call_operand.vmem [shape: bf16[256,136], index: 3, kind: output, shape index: {}]
  %s4 = sld [smem:[#allocation0]]
  $region45: #{tpu_custom_call.1} parent=0
    _
  %s6 = ssub.s32 1, %s4
  %s7 = scalar_select 0, %s6, %s4
  loop: start=0, step=1, limit=4
  $region2: #{tpu_custom_call.1} parent=0 // loop_pre_header
    _
  $region3: #{tpu_custom_call.1} parent=0 // loop_header
    %s9 = sphi 0, %s13
    %p10 = scmp.ge.s32.totalorder %s9, 4
    %s19 = sphi 0, %s21
    %s22 = sphi 0, %s19
    %s23 = sphi 0, %s22
    %s39 = sphi 0, %s23
    %s43 = sphi 0, %s43
    %s45 = sphi 0, %s43
    %s46 = sphi 0, %s45
    %s60 = sphi 0, %s46
    %s64 = sphi 0, %s64
    %s66 = sphi 0, %s64
    %s67 = sphi 0, %s66
    %s81 = sphi 0, %s67
    %s87 = sphi 0, %s89
    %s90 = sphi 0, %s87
    %s91 = sphi 0, %s90
    %s107 = sphi 0, %s91
  $region4: #{tpu_custom_call.1} parent=0 // loop_header_branch
    %12 = sbr.rel (%p10) target = $region8
  $region5: #{tpu_custom_call.1} parent=0 // loop_body
    %s14 = ssub.s32 %s9, 1
    %s15 = ssub.s32 %s9, 2
    %s16 = sadd.s32 %s9, 1
    %s17 = ssub.s32 %s9, %s16
    %p18 = scmp.eq.s32.totalorder %s17, 0
    %s20 = sadd.s32 %s19, 1
    %s21 = scalar_select %p18, %s19, %s20
    %p24 = pneg %p18
    %p25 = scmp.eq.s32.totalorder %s9, 1
    %p26 = por %p24, %p25
    %p27 = scmp.ne.s32.totalorder %s19, %s22
    %p28 = scmp.eq.s32.totalorder %s9, 0
    %p29 = por %p27, %p28
    %p30 = scmp.ne.s32.totalorder %s19, %s22
    %p31 = scmp.eq.s32.totalorder %s14, 1
    %p32 = por %p30, %p31
    %p33 = scmp.ne.s32.totalorder %s22, %s23
    %p34 = scmp.eq.s32.totalorder %s14, 0
    %p35 = por %p33, %p34
    %p36 = scmp.ne.s32.totalorder %s22, %s23
    %p37 = scmp.eq.s32.totalorder %s15, 1
    %p38 = por %p36, %p37
    %p40 = scmp.ne.s32.totalorder %s23, %s39
    %p41 = scmp.eq.s32.totalorder %s15, 0
    %p42 = por %p40, %p41
    %s44 = sadd.s32 %s43, 1
    %p47 = scmp.eq.s32.totalorder %s9, 1
    %p48 = scmp.ne.s32.totalorder %s43, %s45
    %p49 = scmp.eq.s32.totalorder %s9, 0
    %p50 = por %p48, %p49
    %p51 = scmp.ne.s32.totalorder %s43, %s45
    %p52 = scmp.eq.s32.totalorder %s14, 1
    %p53 = por %p51, %p52
    %p54 = scmp.ne.s32.totalorder %s45, %s46
    %p55 = scmp.eq.s32.totalorder %s14, 0
    %p56 = por %p54, %p55
    %p57 = scmp.ne.s32.totalorder %s45, %s46
    %p58 = scmp.eq.s32.totalorder %s15, 1
    %p59 = por %p57, %p58
    %p61 = scmp.ne.s32.totalorder %s46, %s60
    %p62 = scmp.eq.s32.totalorder %s15, 0
    %p63 = por %p61, %p62
    %s65 = sadd.s32 %s64, 1
    %p68 = scmp.eq.s32.totalorder %s9, 1
    %p69 = scmp.ne.s32.totalorder %s64, %s66
    %p70 = scmp.eq.s32.totalorder %s9, 0
    %p71 = por %p69, %p70
    %p72 = scmp.ne.s32.totalorder %s64, %s66
    %p73 = scmp.eq.s32.totalorder %s14, 1
    %p74 = por %p72, %p73
    %p75 = scmp.ne.s32.totalorder %s66, %s67
    %p76 = scmp.eq.s32.totalorder %s14, 0
    %p77 = por %p75, %p76
    %p78 = scmp.ne.s32.totalorder %s66, %s67
    %p79 = scmp.eq.s32.totalorder %s15, 1
    %p80 = por %p78, %p79
    %p82 = scmp.ne.s32.totalorder %s67, %s81
    %p83 = scmp.eq.s32.totalorder %s15, 0
    %p84 = por %p82, %p83
    %s85 = ssub.s32 %s9, %s16
    %p86 = scmp.eq.s32.totalorder %s85, 0
    %s88 = sadd.s32 %s87, 1
    %s89 = scalar_select %p86, %s87, %s88
    %p92 = pneg %p86
    %p93 = scmp.eq.s32.totalorder %s9, 1
    %p94 = por %p92, %p93
    %p95 = scmp.ne.s32.totalorder %s87, %s90
    %p96 = scmp.eq.s32.totalorder %s9, 0
    %p97 = por %p95, %p96
    %p98 = scmp.ne.s32.totalorder %s87, %s90
    %p99 = scmp.eq.s32.totalorder %s14, 1
    %p100 = por %p98, %p99
    %p101 = scmp.ne.s32.totalorder %s90, %s91
    %p102 = scmp.eq.s32.totalorder %s14, 0
    %p103 = por %p101, %p102
    %p104 = scmp.ne.s32.totalorder %s90, %s91
    %p105 = scmp.eq.s32.totalorder %s15, 1
    %p106 = por %p104, %p105
    %p108 = scmp.ne.s32.totalorder %s91, %s107
    %p109 = scmp.eq.s32.totalorder %s15, 0
    %p110 = por %p108, %p109
    %p111 = scmp.le.s32.totalorder 1, %s9
    %p112 = scmp.lt.s32.totalorder %s9, 3
    %p113 = pnand %p111, %p112
    %p114 = pneg %p113
    // Predicated region
    $region9: #{tpu_custom_call.1} parent=5 // pred_check
      _
    $region10: #{tpu_custom_call.1} parent=5 // pred_check_branch
      %116 = sbr.rel (%p113) target = $region12
    $region11: #{tpu_custom_call.1} parent=5 // pred_region
      %s117 = ssub.s32 %s9, 1
      // Predicated region
      $region13: #{tpu_custom_call.1} parent=11 // pred_check
        %p118 = pneg %p56
      $region14: #{tpu_custom_call.1} parent=11 // pred_check_branch
        %120 = sbr.rel (%p118) target = $region16
      $region15: #{tpu_custom_call.1} parent=11 // pred_region
        _
      $region16: #{tpu_custom_call.1} parent=11 // pred_fallthru
        _
      // Predicated region
      $region17: #{tpu_custom_call.1} parent=11 // pred_check
        %p121 = pneg %p77
      $region18: #{tpu_custom_call.1} parent=11 // pred_check_branch
        %123 = sbr.rel (%p121) target = $region20
      $region19: #{tpu_custom_call.1} parent=11 // pred_region
        _
      $region20: #{tpu_custom_call.1} parent=11 // pred_fallthru
        _
    $region12: #{tpu_custom_call.1} parent=5 // pred_fallthru
      _
    %p124 = scmp.lt.s32.totalorder %s9, 2
    // Predicated region
    $region21: #{tpu_custom_call.1} parent=5 // pred_check
      %p125 = pneg %p124
    $region22: #{tpu_custom_call.1} parent=5 // pred_check_branch
      %127 = sbr.rel (%p125) target = $region24
    $region23: #{tpu_custom_call.1} parent=5 // pred_region
      // Predicated region
      $region25: #{tpu_custom_call.1} parent=23 // pred_check
        %p128 = pneg %p29
      $region26: #{tpu_custom_call.1} parent=23 // pred_check_branch
        %130 = sbr.rel (%p128) target = $region28
      $region27: #{tpu_custom_call.1} parent=23 // pred_region
        %s131 = smul.u32 16, %s9
        %p132 = scmp.lt.s32.totalorder %s131, 31
        %s133 = scalar_select %p132, %s131, 31
        %s134 = smul.addr %s133, 4
        %s135 = scalar_lea.vmem %s0, %s134
        %s136 = smul.u32 16, %s9
      $region28: #{tpu_custom_call.1} parent=23 // pred_fallthru
        _
    $region24: #{tpu_custom_call.1} parent=5 // pred_fallthru
      _
    %p137 = scmp.le.s32.totalorder 1, %s9
    %p138 = scmp.lt.s32.totalorder %s9, 3
    %p139 = pnand %p137, %p138
    %p140 = pneg %p139
    // Predicated region
    $region29: #{tpu_custom_call.1} parent=5 // pred_check
      _
    $region30: #{tpu_custom_call.1} parent=5 // pred_check_branch
      %142 = sbr.rel (%p139) target = $region32
    $region31: #{tpu_custom_call.1} parent=5 // pred_region
      %s143 = ssub.s32 %s9, 1
      %s144 = smul.u32 16, %s14
      %p145 = scmp.lt.s32.totalorder %s144, 31
      %s146 = scalar_select %p145, %s144, 31
      %s147 = smul.addr %s146, 4
      %s148 = scalar_lea.vmem %s0, %s147
      %p149 = pneg %p35
      %p150 = pneg %p32
      %p151 = pneg %p56
      %p152 = pneg %p53
      %p153 = pneg %p77
      %p154 = pneg %p74
      %p155 = pneg %p103
      %p156 = pneg %p100
      %s157 = smul.u32 16, %s14
      %p158 = scmp.lt.s32.totalorder %s157, 31
      %s159 = scalar_select %p158, %s157, 31
      %s160 = smul.addr %s159, 2
      %s161 = smul.addr %s160, 4
      %s162 = scalar_lea.vmem %s3, %s161
      %s163 = smul.u32 16, %s14
      %p164 = scmp.lt.s32.totalorder %s163, 31
      %s165 = scalar_select %p164, %s163, 31
      %s166 = smul.addr %s165, 4
      %s167 = scalar_lea.vmem %s0, %s166
      %s168 = smul.u32 16, %s14
      %s169 = smul.u32 16, %s14
      %p170 = scmp.lt.s32.totalorder %s169, 31
      %s171 = scalar_select %p170, %s169, 31
      %s172 = smul.addr %s171, 2
      %s173 = smul.addr %s172, 4
      %s174 = scalar_lea.vmem %s3, %s173
      %s175 = smul.u32 16, %s14
      %v177 = vld [vmem:[%s167] sm:$0xf]
      %v178 = vld [vmem:[%s167 + $0x4] sm:$0xf]
      %v179 = vld [vmem:[%s167 + $0x8] sm:$0xf]
      %v180 = vld [vmem:[%s167 + $0xc] sm:$0xf]
      %v181 = vld [vmem:[%s167 + $0x10] sm:$0xf]
      %v182 = vld [vmem:[%s167 + $0x14] sm:$0xf]
      %v183 = vld [vmem:[%s167 + $0x18] sm:$0xf]
      %v184 = vld [vmem:[%s167 + $0x1c] sm:$0xf]
      %v185 = vld [vmem:[%s167 + $0x20] sm:$0xf]
      %v186 = vld [vmem:[%s167 + $0x24] sm:$0xf]
      %v187 = vld [vmem:[%s167 + $0x28] sm:$0xf]
      %v188 = vld [vmem:[%s167 + $0x2c] sm:$0xf]
      %v189 = vld [vmem:[%s167 + $0x30] sm:$0xf]
      %v190 = vld [vmem:[%s167 + $0x34] sm:$0xf]
      %v191 = vld [vmem:[%s167 + $0x38] sm:$0xf]
      %v192 = vld [vmem:[%s167 + $0x3c] sm:$0xf]
      %v193 = vld [vmem:[%s1] sm:$0xff]
      %v194 = vld [vmem:[%s1 + $0x8] sm:$0xff]
      %v195 = vld [vmem:[%s1 + $0x10] sm:$0xff]
      %v196 = vld [vmem:[%s1 + $0x18] sm:$0xff]
      %v197 = vld [vmem:[%s1 + $0x20] sm:$0xff]
      %v198 = vld [vmem:[%s1 + $0x28] sm:$0xff]
      %v199 = vld [vmem:[%s1 + $0x30] sm:$0xff]
      %v200 = vld [vmem:[%s1 + $0x38] sm:$0xff]
      %v201 = vld [vmem:[%s2] sm:$0x3]
      %v203 = vperm.slane %v201, 0
      %v204 = vperm.slane %v201, 1
      %v223 = vunpack.c.l.b16 %v177
      %v224 = vunpack.c.l.b16 %v178
      %v225 = vunpack.c.l.b16 %v179
      %v226 = vunpack.c.l.b16 %v180
      %v227 = vunpack.c.l.b16 %v181
      %v228 = vunpack.c.l.b16 %v182
      %v229 = vunpack.c.l.b16 %v183
      %v230 = vunpack.c.l.b16 %v184
      %v231 = vunpack.c.l.b16 %v185
      %v232 = vunpack.c.l.b16 %v186
      %v233 = vunpack.c.l.b16 %v187
      %v234 = vunpack.c.l.b16 %v188
      %v235 = vunpack.c.l.b16 %v189
      %v236 = vunpack.c.l.b16 %v190
      %v237 = vunpack.c.l.b16 %v191
      %v238 = vunpack.c.l.b16 %v192
      %v239 = vpack.c.b16 %v224, %v223
      %v240 = vpack.c.b16 %v226, %v225
      %v241 = vpack.c.b16 %v228, %v227
      %v242 = vpack.c.b16 %v230, %v229
      %v243 = vpack.c.b16 %v232, %v231
      %v244 = vpack.c.b16 %v234, %v233
      %v245 = vpack.c.b16 %v236, %v235
      %v246 = vpack.c.b16 %v238, %v237
      %v255 = vunpack.c.l.b16 %v193
      %v256 = vunpack.c.h.b16 %v193
      %v257 = vunpack.c.l.b16 %v194
      %v258 = vunpack.c.h.b16 %v194
      %v259 = vunpack.c.l.b16 %v195
      %v260 = vunpack.c.h.b16 %v195
      %v261 = vunpack.c.l.b16 %v196
      %v262 = vunpack.c.h.b16 %v196
      %v263 = vunpack.c.l.b16 %v197
      %v264 = vunpack.c.h.b16 %v197
      %v265 = vunpack.c.l.b16 %v198
      %v266 = vunpack.c.h.b16 %v198
      %v267 = vunpack.c.l.b16 %v199
      %v268 = vunpack.c.h.b16 %v199
      %v269 = vunpack.c.l.b16 %v200
      %v270 = vunpack.c.h.b16 %v200
      %v271 = vpack.c.b16 %v257, %v255
      %v272 = vpack.c.b16 %v258, %v256
      %v273 = vpack.c.b16 %v261, %v259
      %v274 = vpack.c.b16 %v262, %v260
      %v275 = vpack.c.b16 %v265, %v263
      %v276 = vpack.c.b16 %v266, %v264
      %v277 = vpack.c.b16 %v269, %v267
      %v278 = vpack.c.b16 %v270, %v268
      %vm287 = vcmask 523264
      %v289 = vsel %vm287, %v239, 0
      %v292 = vsel %vm287, %v240, 0
      %v295 = vsel %vm287, %v241, 0
      %v298 = vsel %vm287, %v242, 0
      %v301 = vsel %vm287, %v243, 0
      %v304 = vsel %vm287, %v244, 0
      %v307 = vsel %vm287, %v245, 0
      %v310 = vsel %vm287, %v246, 0
      %312 = vmatpush.bf16.msra.mxu0 0
      %313 = vmatpush.bf16.msra.mxu0 0
      %314 = vmatpush.bf16.msra.mxu0 0
      %315 = vmatpush.bf16.msra.mxu0 0
      %316 = vmatpush.bf16.msra.mxu0 %v277
      %317 = vmatpush.bf16.msra.mxu0 %v275
      %318 = vmatpush.bf16.msra.mxu0 %v273
      %319 = vmatpush.bf16.msra.mxu0 %v271
      %320 = vmatmul.bf16.gmra.mxu0 %v289
      %v321 = vpop.f32.mrf.mxu0
      %v322 = vadd.f32 %v203, %v321
      %v323 = vpop.f32.mrf.mxu0
      %v324 = vadd.f32 %v203, %v323
      %325 = vmatmul.bf16.gmra.mxu0 %v292
      %v326 = vpop.f32.mrf.mxu0
      %v327 = vadd.f32 %v203, %v326
      %v328 = vpop.f32.mrf.mxu0
      %v329 = vadd.f32 %v203, %v328
      %330 = vmatmul.bf16.gmra.mxu0 %v295
      %v331 = vpop.f32.mrf.mxu0
      %v332 = vadd.f32 %v203, %v331
      %v333 = vpop.f32.mrf.mxu0
      %v334 = vadd.f32 %v203, %v333
      %335 = vmatmul.bf16.gmra.mxu0 %v298
      %v336 = vpop.f32.mrf.mxu0
      %v337 = vadd.f32 %v203, %v336
      %v338 = vpop.f32.mrf.mxu0
      %v339 = vadd.f32 %v203, %v338
      %340 = vmatmul.bf16.gmra.mxu0 %v301
      %v341 = vpop.f32.mrf.mxu0
      %v342 = vadd.f32 %v203, %v341
      %v343 = vpop.f32.mrf.mxu0
      %v344 = vadd.f32 %v203, %v343
      %345 = vmatmul.bf16.gmra.mxu0 %v304
      %v346 = vpop.f32.mrf.mxu0
      %v347 = vadd.f32 %v203, %v346
      %v348 = vpop.f32.mrf.mxu0
      %v349 = vadd.f32 %v203, %v348
      %350 = vmatmul.bf16.gmra.mxu0 %v307
      %v351 = vpop.f32.mrf.mxu0
      %v352 = vadd.f32 %v203, %v351
      %v353 = vpop.f32.mrf.mxu0
      %v354 = vadd.f32 %v203, %v353
      %355 = vmatmul.bf16.gmra.mxu0 %v310
      %v356 = vpop.f32.mrf.mxu0
      %v357 = vadd.f32 %v203, %v356
      %v358 = vpop.f32.mrf.mxu0
      %v359 = vadd.f32 %v203, %v358
      %360 = vdwg.mxu0
      %361 = vmatpush.bf16.msra.mxu0 0
      %362 = vmatpush.bf16.msra.mxu0 0
      %363 = vmatpush.bf16.msra.mxu0 0
      %364 = vmatpush.bf16.msra.mxu0 0
      %365 = vmatpush.bf16.msra.mxu0 %v278
      %366 = vmatpush.bf16.msra.mxu0 %v276
      %367 = vmatpush.bf16.msra.mxu0 %v274
      %368 = vmatpush.bf16.msra.mxu0 %v272
      %369 = vmatmul.bf16.gmra.mxu0 %v289
      %v370 = vpop.f32.mrf.mxu0
      %v371 = vadd.f32 %v204, %v370
      %v372 = vpop.f32.mrf.mxu0
      %v373 = vadd.f32 %v204, %v372
      %374 = vmatmul.bf16.gmra.mxu0 %v292
      %v375 = vpop.f32.mrf.mxu0
      %v376 = vadd.f32 %v204, %v375
      %v377 = vpop.f32.mrf.mxu0
      %v378 = vadd.f32 %v204, %v377
      %379 = vmatmul.bf16.gmra.mxu0 %v295
      %v380 = vpop.f32.mrf.mxu0
      %v381 = vadd.f32 %v204, %v380
      %v382 = vpop.f32.mrf.mxu0
      %v383 = vadd.f32 %v204, %v382
      %384 = vmatmul.bf16.gmra.mxu0 %v298
      %v385 = vpop.f32.mrf.mxu0
      %v386 = vadd.f32 %v204, %v385
      %v387 = vpop.f32.mrf.mxu0
      %v388 = vadd.f32 %v204, %v387
      %389 = vmatmul.bf16.gmra.mxu0 %v301
      %v390 = vpop.f32.mrf.mxu0
      %v391 = vadd.f32 %v204, %v390
      %v392 = vpop.f32.mrf.mxu0
      %v393 = vadd.f32 %v204, %v392
      %394 = vmatmul.bf16.gmra.mxu0 %v304
      %v395 = vpop.f32.mrf.mxu0
      %v396 = vadd.f32 %v204, %v395
      %v397 = vpop.f32.mrf.mxu0
      %v398 = vadd.f32 %v204, %v397
      %399 = vmatmul.bf16.gmra.mxu0 %v307
      %v400 = vpop.f32.mrf.mxu0
      %v401 = vadd.f32 %v204, %v400
      %v402 = vpop.f32.mrf.mxu0
      %v403 = vadd.f32 %v204, %v402
      %404 = vmatmul.bf16.gmra.mxu0 %v310
      %v405 = vpop.f32.mrf.mxu0
      %v406 = vadd.f32 %v204, %v405
      %v407 = vpop.f32.mrf.mxu0
      %v408 = vadd.f32 %v204, %v407
      %409 = vdwg.mxu0
      %vm410 = vcmp.eq.f32.partialorder %v322, %v322
      %vm411 = vcmp.eq.f32.partialorder %v371, %v371
      %vm412 = vcmp.eq.f32.partialorder %v324, %v324
      %vm413 = vcmp.eq.f32.partialorder %v373, %v373
      %vm414 = vcmp.eq.f32.partialorder %v327, %v327
      %vm415 = vcmp.eq.f32.partialorder %v376, %v376
      %vm416 = vcmp.eq.f32.partialorder %v329, %v329
      %vm417 = vcmp.eq.f32.partialorder %v378, %v378
      %vm418 = vcmp.eq.f32.partialorder %v332, %v332
      %vm419 = vcmp.eq.f32.partialorder %v381, %v381
      %vm420 = vcmp.eq.f32.partialorder %v334, %v334
      %vm421 = vcmp.eq.f32.partialorder %v383, %v383
      %vm422 = vcmp.eq.f32.partialorder %v337, %v337
      %vm423 = vcmp.eq.f32.partialorder %v386, %v386
      %vm424 = vcmp.eq.f32.partialorder %v339, %v339
      %vm425 = vcmp.eq.f32.partialorder %v388, %v388
      %vm426 = vcmp.eq.f32.partialorder %v342, %v342
      %vm427 = vcmp.eq.f32.partialorder %v391, %v391
      %vm428 = vcmp.eq.f32.partialorder %v344, %v344
      %vm429 = vcmp.eq.f32.partialorder %v393, %v393
      %vm430 = vcmp.eq.f32.partialorder %v347, %v347
      %vm431 = vcmp.eq.f32.partialorder %v396, %v396
      %vm432 = vcmp.eq.f32.partialorder %v349, %v349
      %vm433 = vcmp.eq.f32.partialorder %v398, %v398
      %vm434 = vcmp.eq.f32.partialorder %v352, %v352
      %vm435 = vcmp.eq.f32.partialorder %v401, %v401
      %vm436 = vcmp.eq.f32.partialorder %v354, %v354
      %vm437 = vcmp.eq.f32.partialorder %v403, %v403
      %vm438 = vcmp.eq.f32.partialorder %v357, %v357
      %vm439 = vcmp.eq.f32.partialorder %v406, %v406
      %vm440 = vcmp.eq.f32.partialorder %v359, %v359
      %vm441 = vcmp.eq.f32.partialorder %v408, %v408
      %v442 = vsel %vm410, %v322, 0.0
      %v443 = vsel %vm411, %v371, 0.0
      %v444 = vsel %vm412, %v324, 0.0
      %v445 = vsel %vm413, %v373, 0.0
      %v446 = vsel %vm414, %v327, 0.0
      %v447 = vsel %vm415, %v376, 0.0
      %v448 = vsel %vm416, %v329, 0.0
      %v449 = vsel %vm417, %v378, 0.0
      %v450 = vsel %vm418, %v332, 0.0
      %v451 = vsel %vm419, %v381, 0.0
      %v452 = vsel %vm420, %v334, 0.0
      %v453 = vsel %vm421, %v383, 0.0
      %v454 = vsel %vm422, %v337, 0.0
      %v455 = vsel %vm423, %v386, 0.0
      %v456 = vsel %vm424, %v339, 0.0
      %v457 = vsel %vm425, %v388, 0.0
      %v458 = vsel %vm426, %v342, 0.0
      %v459 = vsel %vm427, %v391, 0.0
      %v460 = vsel %vm428, %v344, 0.0
      %v461 = vsel %vm429, %v393, 0.0
      %v462 = vsel %vm430, %v347, 0.0
      %v463 = vsel %vm431, %v396, 0.0
      %v464 = vsel %vm432, %v349, 0.0
      %v465 = vsel %vm433, %v398, 0.0
      %v466 = vsel %vm434, %v352, 0.0
      %v467 = vsel %vm435, %v401, 0.0
      %v468 = vsel %vm436, %v354, 0.0
      %v469 = vsel %vm437, %v403, 0.0
      %v470 = vsel %vm438, %v357, 0.0
      %v471 = vsel %vm439, %v406, 0.0
      %v472 = vsel %vm440, %v359, 0.0
      %v473 = vsel %vm441, %v408, 0.0
      %v474 = vpack.c.bf16 %v443, %v442
      %v475 = vpack.c.bf16 %v445, %v444
      %v476 = vpack.c.bf16 %v447, %v446
      %v477 = vpack.c.bf16 %v449, %v448
      %v478 = vpack.c.bf16 %v451, %v450
      %v479 = vpack.c.bf16 %v453, %v452
      %v480 = vpack.c.bf16 %v455, %v454
      %v481 = vpack.c.bf16 %v457, %v456
      %v482 = vpack.c.bf16 %v459, %v458
      %v483 = vpack.c.bf16 %v461, %v460
      %v484 = vpack.c.bf16 %v463, %v462
      %v485 = vpack.c.bf16 %v465, %v464
      %v486 = vpack.c.bf16 %v467, %v466
      %v487 = vpack.c.bf16 %v469, %v468
      %v488 = vpack.c.bf16 %v471, %v470
      %v489 = vpack.c.bf16 %v473, %v472
      %vm490 = vcmask 1043456
      %vm491 = vcmask 64516
      %vm492 = vmor %vm491, %vm490
      %493 = vst.msk [vmem:[%s174] sm:$0xff] %vm492, %v474
      %494 = vst.msk [vmem:[%s174 + $0x8] sm:$0xff] %vm492, %v475
      %495 = vst.msk [vmem:[%s174 + $0x10] sm:$0xff] %vm492, %v476
      %496 = vst.msk [vmem:[%s174 + $0x18] sm:$0xff] %vm492, %v477
      %497 = vst.msk [vmem:[%s174 + $0x20] sm:$0xff] %vm492, %v478
      %498 = vst.msk [vmem:[%s174 + $0x28] sm:$0xff] %vm492, %v479
      %499 = vst.msk [vmem:[%s174 + $0x30] sm:$0xff] %vm492, %v480
      %500 = vst.msk [vmem:[%s174 + $0x38] sm:$0xff] %vm492, %v481
      %501 = vst.msk [vmem:[%s174 + $0x40] sm:$0xff] %vm492, %v482
      %502 = vst.msk [vmem:[%s174 + $0x48] sm:$0xff] %vm492, %v483
      %503 = vst.msk [vmem:[%s174 + $0x50] sm:$0xff] %vm492, %v484
      %504 = vst.msk [vmem:[%s174 + $0x58] sm:$0xff] %vm492, %v485
      %505 = vst.msk [vmem:[%s174 + $0x60] sm:$0xff] %vm492, %v486
      %506 = vst.msk [vmem:[%s174 + $0x68] sm:$0xff] %vm492, %v487
      %507 = vst.msk [vmem:[%s174 + $0x70] sm:$0xff] %vm492, %v488
      %508 = vst.msk [vmem:[%s174 + $0x78] sm:$0xff] %vm492, %v489
      %s509 = smul.u32 16, %s14
      %p510 = scmp.lt.s32.totalorder %s509, 31
      %s511 = scalar_select %p510, %s509, 31
      %s512 = smul.addr %s511, 2
      %s513 = smul.addr %s512, 4
      %s514 = scalar_lea.vmem %s3, %s513
      // Predicated region
      $region33: #{tpu_custom_call.1} parent=31 // pred_check
        %p515 = pneg %p100
      $region34: #{tpu_custom_call.1} parent=31 // pred_check_branch
        %517 = sbr.rel (%p515) target = $region36
      $region35: #{tpu_custom_call.1} parent=31 // pred_region
        %s518 = smul.u32 16, %s14
      $region36: #{tpu_custom_call.1} parent=31 // pred_fallthru
        _
    $region32: #{tpu_custom_call.1} parent=5 // pred_fallthru
      _
    %p519 = scmp.le.s32.totalorder 2, %s9
    // Predicated region
    $region37: #{tpu_custom_call.1} parent=5 // pred_check
      %p520 = pneg %p519
    $region38: #{tpu_custom_call.1} parent=5 // pred_check_branch
      %522 = sbr.rel (%p520) target = $region40
    $region39: #{tpu_custom_call.1} parent=5 // pred_region
      %s523 = ssub.s32 %s9, 2
      // Predicated region
      $region41: #{tpu_custom_call.1} parent=39 // pred_check
        %p524 = pneg %p106
      $region42: #{tpu_custom_call.1} parent=39 // pred_check_branch
        %526 = sbr.rel (%p524) target = $region44
      $region43: #{tpu_custom_call.1} parent=39 // pred_region
        %s527 = smul.u32 16, %s15
        %p528 = scmp.lt.s32.totalorder %s527, 31
        %s529 = scalar_select %p528, %s527, 31
        %s530 = smul.addr %s529, 2
        %s531 = smul.addr %s530, 4
        %s532 = scalar_lea.vmem %s3, %s531
      $region44: #{tpu_custom_call.1} parent=39 // pred_fallthru
        _
    $region40: #{tpu_custom_call.1} parent=5 // pred_fallthru
      _
  $region6: #{tpu_custom_call.1} parent=0 // loop_footer
    %s13 = sadd.s32 1, %s9
  $region7: #{tpu_custom_call.1} parent=0 // loop_footer_branch
    %8 = sbr.rel target = $region3
  $region8: #{tpu_custom_call.1} parent=0 // loop_exit
    _

</llo_original>
